<compile_context>
chip_gen: v7x
topology: tpu7x:2x2x1
jax: 0.10.0
libtpu: 0.0.40
codegen_flags: <defaults>
</compile_context>

<pallas_src>
import functools

import jax
import jax.numpy as jnp
from jax.experimental import pallas as pl
from jax.experimental.pallas import tpu as pltpu


# ---------------------------------------------------------------------------
# helpers
# ---------------------------------------------------------------------------
def _layer_norm(x, gamma, eps=1e-5):
    # PyTorch LayerNorm (bias=False): biased variance, eps inside the sqrt.
    mean = jnp.mean(x, axis=-1, keepdims=True)
    xc = x - mean
    var = jnp.mean(xc * xc, axis=-1, keepdims=True)
    return xc * jax.lax.rsqrt(var + eps) * gamma


def _pick_tile(total, target, multiple):
    """Largest divisor of `total` that is <= target and a multiple of
    `multiple`; falls back to `total` (full dim, always legal) if none."""
    best = None
    for cand in range(multiple, min(total, target) + 1, multiple):
        if total % cand == 0:
            best = cand
    return best if best is not None else total


def _bspec(block_shape, index_map, buffer_count=None):
    """BlockSpec with optional pipeline_mode=pl.Buffered(n); graceful fallback."""
    if buffer_count is not None and hasattr(pl, "Buffered"):
        try:
            return pl.BlockSpec(block_shape, index_map,
                                pipeline_mode=pl.Buffered(buffer_count))
        except TypeError:
            pass
    return pl.BlockSpec(block_shape, index_map)


def _vmem_cap_bytes():
    cap = 48 * 1024 * 1024  # conservative: leaves headroom on v7x's 64 MiB VMEM
    try:
        info = pltpu.get_tpu_info()
        phys = getattr(info, "vmem_capacity_bytes", None)
        if phys:
            cap = max(32 * 1024 * 1024,
                      min(int(phys) - 16 * 1024 * 1024, 100 * 1024 * 1024))
    except Exception:
        pass
    return cap


def _vmem_limit(required_bytes):
    return int(min(_vmem_cap_bytes(), max(32 * 1024 * 1024, required_bytes)))


# ---------------------------------------------------------------------------
# one-time parameter preparation (hoisted out of the per-call wrapper)
# ---------------------------------------------------------------------------
def prepare_encoder_params(w_qkv, w_out, gamma1, w_fc1, w_fc2, gamma2, *,
                           num_heads, matmul_dtype=None):
    D = w_out.shape[0]
    d_hidden = w_fc1.shape[1]
    assert w_qkv.shape == (D, 3 * D)
    assert w_out.shape == (D, D)
    assert w_fc1.shape == (D, d_hidden) and w_fc2.shape == (d_hidden, D)
    assert D % num_heads == 0 and D // num_heads > 0
    mm_dtype = (jnp.dtype(matmul_dtype) if matmul_dtype is not None
                else jnp.dtype(w_qkv.dtype))
    # (3, D, D): kernel 1 streams each of W_q / W_k / W_v exactly once and the
    # (B, 3, T, D) qkv output needs no split copy for any D.
    w_qkv3 = jnp.transpose(w_qkv.reshape(D, 3, D), (1, 0, 2)).astype(mm_dtype)
    return dict(
        num_heads=num_heads, d_model=D, d_hidden=d_hidden, mm_dtype=mm_dtype,
        w_qkv3=w_qkv3,
        w_out=w_out.astype(mm_dtype),
        w_fc1_t=jnp.transpose(w_fc1).astype(mm_dtype),   # (4D, D)
        w_fc2=w_fc2.astype(mm_dtype),                    # (4D, D)
        gamma1=gamma1.reshape(1, D).astype(jnp.float32),
        gamma2=gamma2.reshape(1, D).astype(jnp.float32),
    )


# ---------------------------------------------------------------------------
# kernel 1: QKV projection (per split s, per batch, per query tile)
# ---------------------------------------------------------------------------
def _qkv_proj_kernel(x_ref, w_ref, o_ref):
    o_ref[...] = jnp.dot(
        x_ref[...], w_ref[...], preferred_element_type=jnp.float32
    ).astype(o_ref.dtype)


# ---------------------------------------------------------------------------
# kernel 2: fused encoder-block body (per batch element, per query tile)
# ---------------------------------------------------------------------------
def _encoder_body_kernel(
    x_ref,      # (tq, D)   residual input (original dtype)
    q_ref,      # (tq, D)   Q rows for this query tile (matmul dtype)
    k_ref,      # (T,  D)   all K rows for this batch element
    v_ref,      # (T,  D)   all V rows for this batch element
    wout_ref,   # (D,  D)
    g1_ref,     # (1,  D)   f32
    wfc1t_ref,  # (4D, D)   W_fc1 transposed (hidden chunks slice sublanes)
    wfc2_ref,   # (4D, D)
    g2_ref,     # (1,  D)   f32
    o_ref,      # (tq, D)
    ctx_ref,    # (tq, D)   f32 VMEM scratch: concatenated per-head contexts
    *,
    num_heads: int,
    tk: int,
    hidden_chunk: int,
):
    tq, D = x_ref.shape
    T = k_ref.shape[0]
    d_k = D // num_heads
    num_kv = T // tk
    d_hidden = wfc2_ref.shape[0]
    num_chunks = d_hidden // hidden_chunk
    mm_dtype = q_ref.dtype

    # Fold 1/sqrt(d_k) into Q once: O(tq*D) multiply instead of O(T^2) divide.
    q_all = (q_ref[...].astype(jnp.float32) * (1.0 / d_k ** 0.5)).astype(mm_dtype)

    # ---- multi-head attention, flash-style over key tiles ------------------
    # Per-head contexts land in the ctx VMEM scratch so (a) the output
    # projection runs once with a D-deep contraction (full MXU depth) and
    # (b) per-head m/l/acc live ranges end at the scratch write.
    for h in range(num_heads):                     # static per-head column slices
        qh = q_all[:, h * d_k:(h + 1) * d_k]       # (tq, d_k)

        def kv_step(j, carry, h=h, qh=qh):
            m_i, l_i, acc = carry
            start = pl.multiple_of(j * tk, tk)
            kh = k_ref[pl.ds(start, tk), pl.ds(h * d_k, d_k)]   # (tk, d_k)
            vh = v_ref[pl.ds(start, tk), pl.ds(h * d_k, d_k)]   # (tk, d_k)
            s = jax.lax.dot_general(               # q @ k^T -> (tq, tk)
                qh, kh, (((1,), (1,)), ((), ())),
                preferred_element_type=jnp.float32)
            m_new = jnp.maximum(m_i, jnp.max(s, axis=-1, keepdims=True))
            alpha = jnp.exp(m_i - m_new)
            p = jnp.exp(s - m_new)
            l_new = alpha * l_i + jnp.sum(p, axis=-1, keepdims=True)
            acc_new = alpha * acc + jnp.dot(
                p.astype(mm_dtype), vh, preferred_element_type=jnp.float32)
            return m_new, l_new, acc_new

        m0 = jnp.full((tq, 1), -jnp.inf, jnp.float32)
        l0 = jnp.zeros((tq, 1), jnp.float32)
        a0 = jnp.zeros((tq, d_k), jnp.float32)
        _, l_f, acc_f = jax.lax.fori_loop(0, num_kv, kv_step, (m0, l0, a0))

        # softmax denominator on the EUP (approx reciprocal), store context.
        ctx_ref[:, h * d_k:(h + 1) * d_k] = acc_f * pl.reciprocal(l_f, approx=True)

    # Single output projection: concat_h(ctx_h) @ W_out, D-deep contraction.
    attn_out = jnp.dot(ctx_ref[...].astype(mm_dtype), wout_ref[...],
                       preferred_element_type=jnp.float32)

    # ---- residual + LayerNorm 1 (f32) --------------------------------------
    h1 = _layer_norm(attn_out + x_ref[...].astype(jnp.float32), g1_ref[...])

    # ---- MLP with hidden-dim chunking (no (tq, 4D) intermediate) -----------
    h1_mm = h1.astype(mm_dtype)

    def mlp_step(c, acc):
        c0 = pl.multiple_of(c * hidden_chunk, hidden_chunk)
        w1c = wfc1t_ref[pl.ds(c0, hidden_chunk), :]             # (chunk, D)
        hid = jax.lax.dot_general(                              # h1 @ W_fc1[:, chunk]
            h1_mm, w1c, (((1,), (1,)), ((), ())),
            preferred_element_type=jnp.float32)
        hid = jnp.maximum(hid, 0.0)
        w2c = wfc2_ref[pl.ds(c0, hidden_chunk), :]              # (chunk, D)
        return acc + jnp.dot(
            hid.astype(mm_dtype), w2c, preferred_element_type=jnp.float32)

    mlp = jax.lax.fori_loop(
        0, num_chunks, mlp_step, jnp.zeros((tq, D), jnp.float32))

    # ---- residual + LayerNorm 2 (f32) --------------------------------------
    out = _layer_norm(mlp + h1, g2_ref[...])
    o_ref[...] = out.astype(o_ref.dtype)


# ---------------------------------------------------------------------------
# wrapper
# ---------------------------------------------------------------------------
def encoder_block(x, params, *, tq=None, tk=None, hidden_chunk=None,
                  tq_proj=None):
    B, T, D = x.shape
    assert D == params["d_model"]
    num_heads = params["num_heads"]
    d_hidden = params["d_hidden"]
    mm_dtype = params["mm_dtype"]
    out_dtype = x.dtype

    mm_bytes = jnp.dtype(mm_dtype).itemsize
    x_bytes = jnp.dtype(x.dtype).itemsize
    o_bytes = jnp.dtype(out_dtype).itemsize

    # Tile sizes: second-minor multiples of 8 (f32) / 16 (bf16); tk lane-dense.
    sub = 8 if mm_bytes >= 4 else 16
    tq_proj = tq_proj if tq_proj is not None else _pick_tile(T, 512, sub)
    tq = tq if tq is not None else _pick_tile(T, 256, sub)
    tk = tk if tk is not None else _pick_tile(T, 512, 128)
    hidden_chunk = (hidden_chunk if hidden_chunk is not None
                    else _pick_tile(d_hidden, 512, 128))
    assert T % tq_proj == 0 and T % tq == 0 and T % tk == 0
    assert d_hidden % hidden_chunk == 0

    x_mm = x.astype(mm_dtype)
    # NOTE: with matmul_dtype=bfloat16 the QKV intermediate is materialized in
    # bf16 (rounds activations before the f32 softmax); keep f32 if tighter
    # accuracy is needed.

    # -------------------- kernel 1: QKV projection -------------------------
    # grid (split, batch, query-tile): the W block index is constant across
    # both inner axes, so each of W_q/W_k/W_v is read from HBM exactly once.
    k1_bytes = (2 * tq_proj * D * mm_bytes          # x tile
                + 2 * D * D * mm_bytes              # W split
                + 2 * tq_proj * D * mm_bytes        # out tile
                + 2 * 1024 * 1024)                  # temporaries / slack
    qkv = pl.pallas_call(
        _qkv_proj_kernel,
        out_shape=jax.ShapeDtypeStruct((B, 3, T, D), mm_dtype),
        grid_spec=pltpu.PrefetchScalarGridSpec(
            num_scalar_prefetch=0,
            grid=(3, B, T // tq_proj),
            in_specs=[
                pl.BlockSpec((None, tq_proj, D), lambda s, b, i: (b, i, 0)),
                pl.BlockSpec((None, D, D), lambda s, b, i: (s, 0, 0)),
            ],
            out_specs=pl.BlockSpec((None, None, tq_proj, D),
                                   lambda s, b, i: (b, s, i, 0)),
        ),
        compiler_params=pltpu.CompilerParams(
            dimension_semantics=("parallel", "parallel", "parallel"),
            vmem_limit_bytes=_vmem_limit(k1_bytes),
        ),
    )(x_mm, params["w_qkv3"])

    # -------------------- kernel 2: fused encoder body ---------------------
    kv_bytes = T * D * mm_bytes
    # Single-buffer K/V only when they are large (their block index changes
    # only at batch boundaries, so the non-overlapped DMA there is rare).
    kv_bufs = 1 if 2 * kv_bytes > 8 * 1024 * 1024 else None

    # Explicit in-kernel f32 temporary footprint (scores, accumulators, hidden
    # chunk, layernorm temporaries) instead of a fixed headroom guess.
    tmp_bytes = (4 * tq * tk * 4 + 8 * tq * D * 4
                 + 2 * tq * hidden_chunk * 4 + 2 * 1024 * 1024)

    def body_call(weight_bufs, kv_buf_count):
        k2_bytes = (2 * tq * D * (x_bytes + mm_bytes + o_bytes)          # x, Q, out
                    + 2 * (kv_buf_count or 2) * kv_bytes                 # K, V
                    + (weight_bufs or 2) * (D * D + 2 * d_hidden * D) * mm_bytes
                    + 4 * D * 4                                          # gammas
                    + tq * D * 4                                         # ctx scratch
                    + tmp_bytes)
        kernel = functools.partial(
            _encoder_body_kernel,
            num_heads=num_heads, tk=tk, hidden_chunk=hidden_chunk)
        return pl.pallas_call(
            kernel,
            out_shape=jax.ShapeDtypeStruct((B, T, D), out_dtype),
            grid_spec=pltpu.PrefetchScalarGridSpec(
                num_scalar_prefetch=0,
                grid=(B, T // tq),
                in_specs=[
                    pl.BlockSpec((None, tq, D), lambda b, i: (b, i, 0)),          # x
                    pl.BlockSpec((None, None, tq, D), lambda b, i: (b, 0, i, 0)),  # Q
                    _bspec((None, None, T, D), lambda b, i: (b, 1, 0, 0),
                           kv_buf_count),                                          # K
                    _bspec((None, None, T, D), lambda b, i: (b, 2, 0, 0),
                           kv_buf_count),                                          # V
                    _bspec((D, D), lambda b, i: (0, 0), weight_bufs),              # W_out
                    pl.BlockSpec((1, D), lambda b, i: (0, 0)),                     # gamma1
                    _bspec((d_hidden, D), lambda b, i: (0, 0), weight_bufs),       # W_fc1^T
                    _bspec((d_hidden, D), lambda b, i: (0, 0), weight_bufs),       # W_fc2
                    pl.BlockSpec((1, D), lambda b, i: (0, 0)),                     # gamma2
                ],
                out_specs=pl.BlockSpec((None, tq, D), lambda b, i: (b, i, 0)),
                scratch_shapes=[pltpu.VMEM((tq, D), jnp.float32)],
            ),
            compiler_params=pltpu.CompilerParams(
                dimension_semantics=("parallel", "parallel"),
                vmem_limit_bytes=_vmem_limit(k2_bytes),
            ),
        )(x, qkv, qkv, qkv, params["w_out"], params["gamma1"],
          params["w_fc1_t"], params["w_fc2"], params["gamma2"])

    try:
        out = body_call(1, kv_bufs)
        jax.block_until_ready(out)
    except Exception:
        # Fallback if pipeline_mode=pl.Buffered(n) is unsupported in this
        # environment: default double buffering everywhere.
        out = body_call(None, None)
    return out


def encoder_block_from_weights(x, w_qkv, w_out, gamma1, w_fc1, w_fc2, gamma2,
                               *, num_heads, matmul_dtype=None, **tile_kwargs):
    params = prepare_encoder_params(w_qkv, w_out, gamma1, w_fc1, w_fc2, gamma2,
                                    num_heads=num_heads,
                                    matmul_dtype=matmul_dtype)
    return encoder_block(x, params, **tile_kwargs)


# ---------------------------------------------------------------------------
# pure-JAX reference (eval-mode PyTorch forward)
# ---------------------------------------------------------------------------
def reference_encoder_block(x, w_qkv, w_out, gamma1, w_fc1, w_fc2, gamma2, *,
                            num_heads):
    B, T, D = x.shape
    d_k = D // num_heads
    qkv = x @ w_qkv
    q, k, v = jnp.split(qkv, 3, axis=-1)

    def heads(a):
        return jnp.transpose(a.reshape(B, T, num_heads, d_k), (0, 2, 1, 3))

    qh, kh, vh = heads(q), heads(k), heads(v)
    scores = jnp.einsum("bhtd,bhsd->bhts", qh, kh) / (d_k ** 0.5)
    attn = jax.nn.softmax(scores, axis=-1)
    ctx = jnp.einsum("bhts,bhsd->bhtd", attn, vh)
    ctx = jnp.transpose(ctx, (0, 2, 1, 3)).reshape(B, T, D)
    attn_out = ctx @ w_out

    def ln(a, g, eps=1e-5):
        m = jnp.mean(a, axis=-1, keepdims=True)
        v_ = jnp.mean((a - m) ** 2, axis=-1, keepdims=True)
        return (a - m) / jnp.sqrt(v_ + eps) * g

    h1 = ln(attn_out + x, gamma1)
    mlp = jnp.maximum(h1 @ w_fc1, 0.0) @ w_fc2
    return ln(mlp + h1, gamma2)


if __name__ == "__main__":
    B, T, D, H = 2, 16, 128, 4          # small, lane-aligned shapes

    key = jax.random.PRNGKey(0)
    k_x, k_qkv, k_out, k_fc1, k_fc2 = jax.random.split(key, 5)

    x = jax.random.normal(k_x, (B, T, D), dtype=jnp.float32)
    w_qkv = jax.random.normal(k_qkv, (D, 3 * D), dtype=jnp.float32) / D ** 0.5
    w_out = jax.random.normal(k_out, (D, D), dtype=jnp.float32) / D ** 0.5
    w_fc1 = jax.random.normal(k_fc1, (D, 4 * D), dtype=jnp.float32) / D ** 0.5
    w_fc2 = jax.random.normal(k_fc2, (4 * D, D), dtype=jnp.float32) / (4 * D) ** 0.5
    gamma1 = jnp.ones((D,), dtype=jnp.float32)   # LayerNorm weight (bias=False)
    gamma2 = jnp.ones((D,), dtype=jnp.float32)

    ref = reference_encoder_block(
        x, w_qkv, w_out, gamma1, w_fc1, w_fc2, gamma2, num_heads=H)

    # f32 path; small explicit tiles exercise query / key / hidden-chunk tiling.
    params_f32 = prepare_encoder_params(
        w_qkv, w_out, gamma1, w_fc1, w_fc2, gamma2, num_heads=H)
    out = encoder_block(x, params_f32, tq=8, tk=8, hidden_chunk=256, tq_proj=8)
    out = jax.block_until_ready(out)
    assert out.shape == (B, T, D)
    err = float(jnp.max(jnp.abs(out - ref)))
    assert jnp.allclose(out, ref, atol=1e-2, rtol=1e-2), err

    # bf16-MXU path (v6e / v7x fast path): bf16 matmuls, f32 softmax/LayerNorm,
    # default (larger, lane-dense) tiles.
    params_bf16 = prepare_encoder_params(
        w_qkv, w_out, gamma1, w_fc1, w_fc2, gamma2, num_heads=H,
        matmul_dtype=jnp.bfloat16)
    out_bf16 = encoder_block(x, params_bf16)
    out_bf16 = jax.block_until_ready(out_bf16)
    err_bf16 = float(jnp.max(jnp.abs(out_bf16 - ref)))
    assert jnp.allclose(out_bf16, ref, atol=0.35, rtol=0.05), err_bf16

    print("KERNEL_OK")
</pallas_src>

<mosaic_0001>
module attributes {stable_mosaic.version = 11 : i64} {
  func.func @_qkv_proj_kernel(%arg0: i32, %arg1: i32, %arg2: i32, %arg3: memref<1x8x128xf32, #tpu.memory_space<vmem>>, %arg4: memref<1x128x128xf32, #tpu.memory_space<vmem>>, %arg5: memref<1x1x8x128xf32, #tpu.memory_space<vmem>>) attributes {dimension_semantics = [#tpu.dimension_semantics<parallel>, #tpu.dimension_semantics<parallel>, #tpu.dimension_semantics<parallel>], iteration_bounds = array<i64: 3, 2, 2>, scalar_prefetch = 0 : i64, scratch_operands = 0 : i64, tpu.core_type = #tpu.core_type<tc>, window_params = [{transform_indices = @transform_0, window_bounds = array<i64: 1, 8, 128>}, {transform_indices = @transform_1, window_bounds = array<i64: 1, 128, 128>}, {transform_indices = @transform_2, window_bounds = array<i64: 1, 1, 8, 128>}]} {
    %c0 = arith.constant 0 : index
    %c0_0 = arith.constant 0 : index
    %c0_1 = arith.constant 0 : index
    %0 = vector.load %arg3[%c0, %c0_0, %c0_1] : memref<1x8x128xf32, #tpu.memory_space<vmem>>, vector<1x8x128xf32>
    %1 = vector.shape_cast %0 : vector<1x8x128xf32> to vector<8x128xf32>
    %c0_2 = arith.constant 0 : index
    %c0_3 = arith.constant 0 : index
    %c0_4 = arith.constant 0 : index
    %2 = vector.load %arg4[%c0_2, %c0_3, %c0_4] : memref<1x128x128xf32, #tpu.memory_space<vmem>>, vector<1x128x128xf32>
    %3 = vector.shape_cast %2 : vector<1x128x128xf32> to vector<128x128xf32>
    %cst = arith.constant dense<0.000000e+00> : vector<8x128xf32>
    %4 = tpu.matmul %1, %3, %cst {dimension_numbers = #tpu.dot_dimension_numbers<[1], [0], [0], [1], [0, 0, 1, 1], [], []>} : vector<8x128xf32>, vector<128x128xf32>, vector<8x128xf32> -> vector<8x128xf32>
    %c0_5 = arith.constant 0 : index
    %c0_6 = arith.constant 0 : index
    %c0_7 = arith.constant 0 : index
    %c0_8 = arith.constant 0 : index
    %5 = vector.load %arg5[%c0_5, %c0_6, %c0_7, %c0_8] : memref<1x1x8x128xf32, #tpu.memory_space<vmem>>, vector<1x1x8x128xf32>
    %6 = vector.shape_cast %5 : vector<1x1x8x128xf32> to vector<8x128xf32>
    %7 = vector.shape_cast %4 : vector<8x128xf32> to vector<1x1x8x128xf32>
    tpu.vector_store %arg5[%c0_5, %c0_6, %c0_7, %c0_8], %7 {strides = array<i32>} : memref<1x1x8x128xf32, #tpu.memory_space<vmem>>, vector<1x1x8x128xf32>,
    return
  }
  func.func @transform_0(%arg0: i32, %arg1: i32, %arg2: i32) -> (i32, i32, i32) {
    %c0_i32 = arith.constant 0 : i32
    %c0_i32_0 = arith.constant 0 : i32
    return %arg1, %arg2, %c0_i32 : i32, i32, i32
  }
  func.func @transform_1(%arg0: i32, %arg1: i32, %arg2: i32) -> (i32, i32, i32) {
    %c0_i32 = arith.constant 0 : i32
    %c0_i32_0 = arith.constant 0 : i32
    %c0_i32_1 = arith.constant 0 : i32
    return %arg0, %c0_i32, %c0_i32_0 : i32, i32, i32
  }
  func.func @transform_2(%arg0: i32, %arg1: i32, %arg2: i32) -> (i32, i32, i32, i32) {
    %c0_i32 = arith.constant 0 : i32
    %c0_i32_0 = arith.constant 0 : i32
    return %arg1, %arg0, %arg2, %c0_i32 : i32, i32, i32, i32
  }
}

</mosaic_0001>

<llo_original>
// kernel: tpu_custom_call.1
$region0: #{tpu_custom_call.1}
  #allocation0 [shape = 'u32[]', space=smem, size = 0x4, offset = 0x4, fixed_abs, tag = 'smem constant byte address 0x4 - core index']
  #allocation1 [shape = 'u32[144,128]{1,0:T(1,128)}', space=vmem, size = 0x12000, scoped, tag = 'internal scratch']
  %s0 = inlined_call_operand.hbm [shape: f32[2,16,128], index: 0, kind: input, shape index: {}]
  %s1 = inlined_call_operand.hbm [shape: f32[3,128,128], index: 1, kind: input, shape index: {}]
  %s2 = inlined_call_operand.hbm [shape: f32[2,3,16,128], index: 2, kind: output, shape index: {}]
  %s3 = sld [smem:[#allocation0]]
  $region49: #{tpu_custom_call.1} parent=0
    _
  %s5 = ssub.s32 1, %s3
  %s6 = scalar_select 0, %s5, %s3
  $region1: #{tpu_custom_call.1} parent=0
    #allocation2 [shape = 'u8[8192]{0}', space=vmem, size = 0x2000, scoped, tag = 'input window, operand 0']
    #allocation3 [shape = 's32[2]{0}', space=sflag, size = 0x8, scoped, tag = 'scoped memory for tpu_custom_call.1']
    #allocation4 [shape = 's32[2]{0}', space=sflag, size = 0x8, scoped, tag = 'scoped memory for tpu_custom_call.1']
    #allocation5 [shape = 'u8[131072]{0}', space=vmem, size = 0x20000, scoped, tag = 'input window, operand 1']
    #allocation6 [shape = 's32[2]{0}', space=sflag, size = 0x8, scoped, tag = 'scoped memory for tpu_custom_call.1']
    #allocation7 [shape = 'u8[8192]{0}', space=vmem, size = 0x2000, scoped, tag = 'output window, operand 0']
    %7 = vsyncpa [#allocation3], 0
    %s8 = scalar_lea.sflag [#allocation3], 1
    %9 = vsyncpa %s8, 0
    %10 = vsyncpa [#allocation6], 0
    %s11 = scalar_lea.sflag [#allocation6], 1
    %12 = vsyncpa %s11, 0
    %13 = vsyncpa [#allocation4], 0
    %s14 = scalar_lea.sflag [#allocation4], 1
    %15 = vsyncpa %s14, 0
    loop: start=0, step=1, limit=14
    $region2: #{tpu_custom_call.1} parent=1 // loop_pre_header
      _
    $region3: #{tpu_custom_call.1} parent=1 // loop_header
      %s17 = sphi 0, %s21
      %p18 = scmp.ge.s32.totalorder %s17, 14
      %s24 = sphi 0, %s43
      %s25 = sphi 0, %s39
      %s26 = sphi 0, %s35
      %s27 = sphi 0, %s24
      %s28 = sphi 0, %s25
      %s29 = sphi 0, %s26
      %s30 = sphi 0, %s27
      %s31 = sphi 0, %s28
      %s32 = sphi 0, %s29
      %s48 = sphi 0, %s50
      %s51 = sphi 0, %s48
      %s52 = sphi 0, %s51
      %s68 = sphi 0, %s52
      %s74 = sphi 0, %s76
      %s77 = sphi 0, %s74
      %s78 = sphi 0, %s77
      %s94 = sphi 0, %s78
      %s104 = sphi 0, %s106
      %s107 = sphi 0, %s104
      %s108 = sphi 0, %s107
      %s124 = sphi 0, %s108
    $region4: #{tpu_custom_call.1} parent=1 // loop_header_branch
      %20 = sbr.rel (%p18) target = $region8
    $region5: #{tpu_custom_call.1} parent=1 // loop_body
      %s22 = ssub.s32 %s17, 1
      %s23 = ssub.s32 %s17, 2
      %s33 = sadd.s32 1, %s26
      %p34 = scmp.ge.s32.totalorder %s33, 2
      %s35 = scalar_select %p34, 0, %s33
      %s36 = sadd.s32 1, %s25
      %s37 = scalar_select %p34, %s36, %s25
      %p38 = scmp.ge.s32.totalorder %s37, 2
      %s39 = scalar_select %p38, 0, %s37
      %s40 = sadd.s32 1, %s24
      %s41 = scalar_select %p38, %s40, %s24
      %p42 = scmp.ge.s32.totalorder %s41, 3
      %s43 = scalar_select %p42, 0, %s41
      %s44 = ssub.s32 %s25, %s39
      %s45 = ssub.s32 %s26, %s35
      %s46 = sor.u32 %s44, %s45
      %p47 = scmp.eq.s32.totalorder %s46, 0
      %s49 = sadd.s32 %s48, 1
      %s50 = scalar_select %p47, %s48, %s49
      %p53 = pneg %p47
      %p54 = scmp.eq.s32.totalorder %s17, 11
      %p55 = por %p53, %p54
      %p56 = scmp.ne.s32.totalorder %s48, %s51
      %p57 = scmp.eq.s32.totalorder %s17, 0
      %p58 = por %p56, %p57
      %p59 = scmp.ne.s32.totalorder %s48, %s51
      %p60 = scmp.eq.s32.totalorder %s22, 11
      %p61 = por %p59, %p60
      %p62 = scmp.ne.s32.totalorder %s51, %s52
      %p63 = scmp.eq.s32.totalorder %s22, 0
      %p64 = por %p62, %p63
      %p65 = scmp.ne.s32.totalorder %s51, %s52
      %p66 = scmp.eq.s32.totalorder %s23, 11
      %p67 = por %p65, %p66
      %p69 = scmp.ne.s32.totalorder %s52, %s68
      %p70 = scmp.eq.s32.totalorder %s23, 0
      %p71 = por %p69, %p70
      %s72 = ssub.s32 %s24, %s43
      %p73 = scmp.eq.s32.totalorder %s72, 0
      %s75 = sadd.s32 %s74, 1
      %s76 = scalar_select %p73, %s74, %s75
      %p79 = pneg %p73
      %p80 = scmp.eq.s32.totalorder %s17, 11
      %p81 = por %p79, %p80
      %p82 = scmp.ne.s32.totalorder %s74, %s77
      %p83 = scmp.eq.s32.totalorder %s17, 0
      %p84 = por %p82, %p83
      %p85 = scmp.ne.s32.totalorder %s74, %s77
      %p86 = scmp.eq.s32.totalorder %s22, 11
      %p87 = por %p85, %p86
      %p88 = scmp.ne.s32.totalorder %s77, %s78
      %p89 = scmp.eq.s32.totalorder %s22, 0
      %p90 = por %p88, %p89
      %p91 = scmp.ne.s32.totalorder %s77, %s78
      %p92 = scmp.eq.s32.totalorder %s23, 11
      %p93 = por %p91, %p92
      %p95 = scmp.ne.s32.totalorder %s78, %s94
      %p96 = scmp.eq.s32.totalorder %s23, 0
      %p97 = por %p95, %p96
      %s98 = ssub.s32 %s25, %s39
      %s99 = ssub.s32 %s24, %s43
      %s100 = sor.u32 %s98, %s99
      %s101 = ssub.s32 %s26, %s35
      %s102 = sor.u32 %s100, %s101
      %p103 = scmp.eq.s32.totalorder %s102, 0
      %s105 = sadd.s32 %s104, 1
      %s106 = scalar_select %p103, %s104, %s105
      %p109 = pneg %p103
      %p110 = scmp.eq.s32.totalorder %s17, 11
      %p111 = por %p109, %p110
      %p112 = scmp.ne.s32.totalorder %s104, %s107
      %p113 = scmp.eq.s32.totalorder %s17, 0
      %p114 = por %p112, %p113
      %p115 = scmp.ne.s32.totalorder %s104, %s107
      %p116 = scmp.eq.s32.totalorder %s22, 11
      %p117 = por %p115, %p116
      %p118 = scmp.ne.s32.totalorder %s107, %s108
      %p119 = scmp.eq.s32.totalorder %s22, 0
      %p120 = por %p118, %p119
      %p121 = scmp.ne.s32.totalorder %s107, %s108
      %p122 = scmp.eq.s32.totalorder %s23, 11
      %p123 = por %p121, %p122
      %p125 = scmp.ne.s32.totalorder %s108, %s124
      %p126 = scmp.eq.s32.totalorder %s23, 0
      %p127 = por %p125, %p126
      %p128 = scmp.le.s32.totalorder 1, %s17
      %p129 = scmp.lt.s32.totalorder %s17, 13
      %p130 = pnand %p128, %p129
      %p131 = pneg %p130
      // Predicated region
      $region9: #{tpu_custom_call.1} parent=5 // pred_check
        _
      $region10: #{tpu_custom_call.1} parent=5 // pred_check_branch
        %133 = sbr.rel (%p130) target = $region12
      $region11: #{tpu_custom_call.1} parent=5 // pred_region
        %s134 = ssub.s32 %s17, 1
      $region12: #{tpu_custom_call.1} parent=5 // pred_fallthru
        _
      %p135 = scmp.lt.s32.totalorder %s17, 12
      // Predicated region
      $region13: #{tpu_custom_call.1} parent=5 // pred_check
        %p136 = pneg %p135
      $region14: #{tpu_custom_call.1} parent=5 // pred_check_branch
        %138 = sbr.rel (%p136) target = $region16
      $region15: #{tpu_custom_call.1} parent=5 // pred_region
        // Predicated region
        $region17: #{tpu_custom_call.1} parent=15 // pred_check
          %p139 = pneg %p58
        $region18: #{tpu_custom_call.1} parent=15 // pred_check_branch
          %141 = sbr.rel (%p139) target = $region20
        $region19: #{tpu_custom_call.1} parent=15 // pred_region
          %s142 = sand.u32 %s48, 1
          %s143 = scalar_lea.sflag [#allocation3], %s142
          %s144 = sand.u32 %s48, 1
          %s145 = smul.addr %s144, 8
          %s146 = scalar_lea.vmem [#allocation2], %s145
          %s148 = ssub.s32 128, 128
          %149 = vsyncadd %s143, %s148
          %s150 = smul.addr %s25, 2
          %s151 = sadd.s32 %s26, %s150
          %s152 = smul.addr %s151, 128
          %s153 = scalar_lea.hbm %s0, %s152
          %s155 = sshll.u32 %s146, 4
          %s156 = int_to_ptr.vmem [resolvable:$true] %s155
          %158 = dma.hbm_to_vmem [thread:$0]  %s153, 128, %s156, %s143
        $region20: #{tpu_custom_call.1} parent=15 // pred_fallthru
          _
        // Predicated region
        $region21: #{tpu_custom_call.1} parent=15 // pred_check
          %p159 = pneg %p84
        $region22: #{tpu_custom_call.1} parent=15 // pred_check_branch
          %161 = sbr.rel (%p159) target = $region24
        $region23: #{tpu_custom_call.1} parent=15 // pred_region
          %s162 = sand.u32 %s74, 1
          %s163 = scalar_lea.sflag [#allocation6], %s162
          %s164 = sand.u32 %s74, 1
          %s165 = smul.addr %s164, 128
          %s166 = scalar_lea.vmem [#allocation5], %s165
          %s168 = ssub.s32 2048, 2048
          %169 = vsyncadd %s163, %s168
          %s170 = smul.addr %s24, 16
          %s171 = smul.addr %s170, 128
          %s172 = scalar_lea.hbm %s1, %s171
          %s173 = sshll.u32 %s166, 4
          %s174 = int_to_ptr.vmem [resolvable:$true] %s173
          %179 = dma.hbm_to_vmem [thread:$0]  %s172, 2048, %s174, %s163, 128, 128, 8
        $region24: #{tpu_custom_call.1} parent=15 // pred_fallthru
          _
      $region16: #{tpu_custom_call.1} parent=5 // pred_fallthru
        _
      %p180 = scmp.le.s32.totalorder 1, %s17
      %p181 = scmp.lt.s32.totalorder %s17, 13
      %p182 = pnand %p180, %p181
      %p183 = pneg %p182
      // Predicated region
      $region25: #{tpu_custom_call.1} parent=5 // pred_check
        _
      $region26: #{tpu_custom_call.1} parent=5 // pred_check_branch
        %185 = sbr.rel (%p182) target = $region28
      $region27: #{tpu_custom_call.1} parent=5 // pred_region
        %s186 = ssub.s32 %s17, 1
        %s187 = sand.u32 %s51, 1
        %s188 = scalar_lea.sflag [#allocation3], %s187
        %s189 = sand.u32 %s51, 1
        %s190 = smul.addr %s189, 8
        %s191 = scalar_lea.vmem [#allocation2], %s190
        // Predicated region
        $region29: #{tpu_custom_call.1} parent=27 // pred_check
          %p192 = pneg %p64
        $region30: #{tpu_custom_call.1} parent=27 // pred_check_branch
          %194 = sbr.rel (%p192) target = $region32
        $region31: #{tpu_custom_call.1} parent=27 // pred_region
          %195 = dma.done %s188, 128
        $region32: #{tpu_custom_call.1} parent=27 // pred_fallthru
          _
        %s196 = sand.u32 %s77, 1
        %s197 = scalar_lea.sflag [#allocation6], %s196
        %s198 = sand.u32 %s77, 1
        %s199 = smul.addr %s198, 128
        %s200 = scalar_lea.vmem [#allocation5], %s199
        // Predicated region
        $region33: #{tpu_custom_call.1} parent=27 // pred_check
          %p201 = pneg %p90
        $region34: #{tpu_custom_call.1} parent=27 // pred_check_branch
          %203 = sbr.rel (%p201) target = $region36
        $region35: #{tpu_custom_call.1} parent=27 // pred_region
          %204 = dma.done %s197, 2048
        $region36: #{tpu_custom_call.1} parent=27 // pred_fallthru
          _
        %s205 = sand.u32 %s51, 1
        %s206 = scalar_lea.sflag [#allocation3], %s205
        %s207 = sand.u32 %s51, 1
        %s208 = smul.addr %s207, 8
        %s209 = scalar_lea.vmem [#allocation2], %s208
        %p210 = pneg %p64
        %p211 = pneg %p61
        %s212 = sand.u32 %s77, 1
        %s213 = scalar_lea.sflag [#allocation6], %s212
        %s214 = sand.u32 %s77, 1
        %s215 = smul.addr %s214, 128
        %s216 = scalar_lea.vmem [#allocation5], %s215
        %p217 = pneg %p90
        %p218 = pneg %p87
        %p219 = pneg %p120
        %p220 = pneg %p117
        %s221 = sand.u32 %s107, 1
        %s222 = scalar_lea.sflag [#allocation4], %s221
        %s223 = sand.u32 %s107, 1
        %s224 = smul.addr %s223, 8
        %s225 = scalar_lea.vmem [#allocation7], %s224
        %v226 = vld [vmem:[%s191] sm:$0xff]
        %v227 = vld [vmem:[%s200] sm:$0xff]
        %v228 = vld [vmem:[%s200 + $0x8] sm:$0xff]
        %v229 = vld [vmem:[%s200 + $0x10] sm:$0xff]
        %v230 = vld [vmem:[%s200 + $0x18] sm:$0xff]
        %v231 = vld [vmem:[%s200 + $0x20] sm:$0xff]
        %v232 = vld [vmem:[%s200 + $0x28] sm:$0xff]
        %v233 = vld [vmem:[%s200 + $0x30] sm:$0xff]
        %v234 = vld [vmem:[%s200 + $0x38] sm:$0xff]
        %v235 = vld [vmem:[%s200 + $0x40] sm:$0xff]
        %v236 = vld [vmem:[%s200 + $0x48] sm:$0xff]
        %v237 = vld [vmem:[%s200 + $0x50] sm:$0xff]
        %v238 = vld [vmem:[%s200 + $0x58] sm:$0xff]
        %v239 = vld [vmem:[%s200 + $0x60] sm:$0xff]
        %v240 = vld [vmem:[%s200 + $0x68] sm:$0xff]
        %v241 = vld [vmem:[%s200 + $0x70] sm:$0xff]
        %v242 = vld [vmem:[%s200 + $0x78] sm:$0xff]
        %243 = vmatprep.subr.mxu0 0.0
        %244 = vmatpush1.msra.mxu0 %v227
        %245 = vmatprep.subr.mxu0 0.0
        %246 = vmatpush1.msra.mxu0 %v228
        %247 = vmatprep.subr.mxu0 0.0
        %248 = vmatpush1.msra.mxu0 %v229
        %249 = vmatprep.subr.mxu0 0.0
        %250 = vmatpush1.msra.mxu0 %v230
        %251 = vmatprep.subr.mxu0 0.0
        %252 = vmatpush1.msra.mxu0 %v231
        %253 = vmatprep.subr.mxu0 0.0
        %254 = vmatpush1.msra.mxu0 %v232
        %255 = vmatprep.subr.mxu0 0.0
        %256 = vmatpush1.msra.mxu0 %v233
        %257 = vmatprep.subr.mxu0 0.0
        %258 = vmatpush1.msra.mxu0 %v234
        %259 = vmatprep.subr.mxu0 0.0
        %260 = vmatpush1.msra.mxu0 %v235
        %261 = vmatprep.subr.mxu0 0.0
        %262 = vmatpush1.msra.mxu0 %v236
        %263 = vmatprep.subr.mxu0 0.0
        %264 = vmatpush1.msra.mxu0 %v237
        %265 = vmatprep.subr.mxu0 0.0
        %266 = vmatpush1.msra.mxu0 %v238
        %267 = vmatprep.subr.mxu0 0.0
        %268 = vmatpush1.msra.mxu0 %v239
        %269 = vmatprep.subr.mxu0 0.0
        %270 = vmatpush1.msra.mxu0 %v240
        %271 = vmatprep.subr.mxu0 0.0
        %272 = vmatpush1.msra.mxu0 %v241
        %273 = vmatprep.subr.mxu0 0.0
        %274 = vmatpush1.msra.mxu0 %v242
        %275 = vmatprep.subr.mxu0 0.0
        %276 = vmatpush1.msra.mxu0 0.0
        %277 = vmatprep.subr.mxu0 0.0
        %278 = vmatpush1.msra.mxu0 0.0
        %279 = vmatprep.subr.mxu0 0.0
        %280 = vmatpush1.msra.mxu0 0.0
        %281 = vmatprep.subr.mxu0 0.0
        %282 = vmatpush1.msra.mxu0 0.0
        %283 = vmatprep.subr.mxu0 0.0
        %284 = vmatpush1.msra.mxu0 0.0
        %285 = vmatprep.subr.mxu0 0.0
        %286 = vmatpush1.msra.mxu0 0.0
        %287 = vmatprep.subr.mxu0 0.0
        %288 = vmatpush1.msra.mxu0 0.0
        %289 = vmatprep.subr.mxu0 0.0
        %290 = vmatpush1.msra.mxu0 0.0
        %291 = vmatprep.subr.mxu0 0.0
        %292 = vmatpush1.msra.mxu0 0.0
        %293 = vmatprep.subr.mxu0 0.0
        %294 = vmatpush1.msra.mxu0 0.0
        %295 = vmatprep.subr.mxu0 0.0
        %296 = vmatpush1.msra.mxu0 0.0
        %297 = vmatprep.subr.mxu0 0.0
        %298 = vmatpush1.msra.mxu0 0.0
        %299 = vmatprep.subr.mxu0 0.0
        %300 = vmatpush1.msra.mxu0 0.0
        %301 = vmatprep.subr.mxu0 0.0
        %302 = vmatpush1.msra.mxu0 0.0
        %303 = vmatprep.subr.mxu0 0.0
        %304 = vmatpush1.msra.mxu0 0.0
        %305 = vmatprep.subr.mxu0 0.0
        %306 = vmatpush1.msra.mxu0 0.0
        %307 = vmatprep.mubr.f32.mxu0 0.0
        %308 = vmatmul.mubr.f32.gmra.mrb[0].mxu0 %v226
        %v309 = vpop.f32.mrb[0].mxu0
        %v310 = vadd.f32 0.0, %v309
        %v311 = vpop.f32.mrb[0].mxu0
        %312 = vdwg.mxu0
        %313 = vst [vmem:[%s225] sm:$0xff] %v310
        %s314 = sand.u32 %s107, 1
        %s315 = scalar_lea.sflag [#allocation4], %s314
        %s316 = sand.u32 %s107, 1
        %s317 = smul.addr %s316, 8
        %s318 = scalar_lea.vmem [#allocation7], %s317
        // Predicated region
        $region37: #{tpu_custom_call.1} parent=27 // pred_check
          %p319 = pneg %p117
        $region38: #{tpu_custom_call.1} parent=27 // pred_check_branch
          %321 = sbr.rel (%p319) target = $region40
        $region39: #{tpu_custom_call.1} parent=27 // pred_region
          %s323 = ssub.s32 128, 128
          %324 = vsyncadd %s315, %s323
          %s325 = smul.addr %s27, 2
          %s326 = sadd.s32 %s29, %s325
          %s327 = smul.addr %s28, 6
          %s328 = sadd.s32 %s326, %s327
          %s329 = smul.addr %s328, 128
          %s330 = scalar_lea.hbm %s2, %s329
          %s332 = sshll.u32 %s318, 4
          %s333 = int_to_ptr.vmem [resolvable:$true] %s332
          %335 = dma.vmem_to_hbm [thread:$0]  %s333, 128, %s330, %s315
        $region40: #{tpu_custom_call.1} parent=27 // pred_fallthru
          _
      $region28: #{tpu_custom_call.1} parent=5 // pred_fallthru
        _
      %p336 = scmp.le.s32.totalorder 2, %s17
      // Predicated region
      $region41: #{tpu_custom_call.1} parent=5 // pred_check
        %p337 = pneg %p336
      $region42: #{tpu_custom_call.1} parent=5 // pred_check_branch
        %339 = sbr.rel (%p337) target = $region44
      $region43: #{tpu_custom_call.1} parent=5 // pred_region
        %s340 = ssub.s32 %s17, 2
        // Predicated region
        $region45: #{tpu_custom_call.1} parent=43 // pred_check
          %p341 = pneg %p123
        $region46: #{tpu_custom_call.1} parent=43 // pred_check_branch
          %343 = sbr.rel (%p341) target = $region48
        $region47: #{tpu_custom_call.1} parent=43 // pred_region
          %s344 = sand.u32 %s108, 1
          %s345 = scalar_lea.sflag [#allocation4], %s344
          %s346 = sand.u32 %s108, 1
          %s347 = smul.addr %s346, 8
          %s348 = scalar_lea.vmem [#allocation7], %s347
          %349 = dma.done %s345, 128
        $region48: #{tpu_custom_call.1} parent=43 // pred_fallthru
          _
      $region44: #{tpu_custom_call.1} parent=5 // pred_fallthru
        _
    $region6: #{tpu_custom_call.1} parent=1 // loop_footer
      %s21 = sadd.s32 1, %s17
    $region7: #{tpu_custom_call.1} parent=1 // loop_footer_branch
      %16 = sbr.rel target = $region3
    $region8: #{tpu_custom_call.1} parent=1 // loop_exit
      _
    %350 = vsyncpa [#allocation3], 1
    %s351 = scalar_lea.sflag [#allocation3], 1
    %352 = vsyncpa %s351, 1
    %353 = vsyncpa [#allocation6], 1
    %s354 = scalar_lea.sflag [#allocation6], 1
    %355 = vsyncpa %s354, 1
    %356 = vsyncpa [#allocation4], 1
    %s357 = scalar_lea.sflag [#allocation4], 1
    %358 = vsyncpa %s357, 1

</llo_original>
